<compile_context>
chip_gen: v7x
topology: tpu7x:2x2x1
jax: 0.10.0
libtpu: 0.0.40
codegen_flags: <defaults>
</compile_context>

<pallas_src>
import functools

import jax
import jax.numpy as jnp
from jax.experimental import pallas as pl
from jax.experimental.pallas import tpu as pltpu


def _self_output_kernel(x_ref, res_ref, wt_ref, vec_ref, o_ref, *, eps):
    # x_ref:   (TR, H) tile of flattened hidden_states
    # res_ref: (TR, H) tile of flattened input_tensor (residual)
    # wt_ref:  (H, H)  dense weight, pre-transposed (W.T), grid-resident
    # vec_ref: (3, H)  stacked [dense_bias; ln_gamma; ln_beta] (f32)
    x = x_ref[...]
    if x.dtype != wt_ref.dtype:
        # Cast activations to the weight dtype so a bf16 weight actually hits
        # the native bf16 MXU path (f32 accumulation below).
        x = x.astype(wt_ref.dtype)
    h = jnp.dot(x, wt_ref[...], preferred_element_type=jnp.float32)

    # Dropout: module evaluated in inference mode -> identity.
    # TODO(synk): training-mode dropout (stateful PRNG mask) intentionally omitted.

    vecs = vec_ref[...].astype(jnp.float32)
    bias = vecs[0:1, :]
    gamma = vecs[1:2, :]
    beta = vecs[2:3, :]

    # Residual + bias in f32, then per-row LayerNorm over the lane axis with
    # biased variance (torch semantics).
    h = h + res_ref[...].astype(jnp.float32) + bias
    mean = jnp.mean(h, axis=-1, keepdims=True)
    centered = h - mean
    var = jnp.mean(centered * centered, axis=-1, keepdims=True)
    y = centered * jax.lax.rsqrt(var + eps) * gamma + beta

    o_ref[...] = y.astype(o_ref.dtype)


def _round_up(x, m):
    return ((x + m - 1) // m) * m


def _vmem_budget_bytes():
    """Per-core VMEM budget with headroom for Mosaic internal scratch."""
    cap = 0
    try:
        info = pltpu.get_tpu_info()
        cap = int(getattr(info, "vmem_capacity_bytes", 0) or 0)
    except Exception:
        cap = 0
    if cap <= 0:
        cap = 64 << 20          # conservative default (v7x per-TC physical)
    # Leave 16 MiB headroom; never ask for more than 96 MiB (v5e/v6e case).
    return max(16 << 20, min(cap - (16 << 20), 96 << 20))


def roberta_self_output_forward(hidden_states, input_tensor, params,
                                *, block_rows=512):
    """Pallas implementation of RobertaSelfOutput.forward (eval mode).

    params must come from prepare_params() (weight pre-transposed; bias/gamma/
    beta fused).  Pass weight_dtype=jnp.bfloat16 to prepare_params on
    v5e/v6e/v7x for the bf16 MXU path; activations are cast in-kernel.
    """
    B, N, H = hidden_states.shape
    BN = B * N

    x2 = hidden_states.reshape(BN, H)
    r2 = input_tensor.reshape(BN, H)

    w_t = params["dense_wt"]                 # (H_in, H_out), pre-transposed
    vecs = params["ln_vecs"]                 # (3, H) f32: bias, gamma, beta

    act_itemsize = jnp.dtype(x2.dtype).itemsize
    w_bytes = H * H * jnp.dtype(w_t.dtype).itemsize
    vec_bytes = 8 * H * 4                    # (3,H) sublane-padded to (8,H)

    budget = _vmem_budget_bytes()

    # Row-tile sizing: as large as block_rows allows, clamped so the
    # double-buffered x/res/out tiles + resident weight fit the VMEM budget.
    avail = max(budget - w_bytes - 2 * vec_bytes - (2 << 20),
                6 * 8 * H * act_itemsize)
    tr_cap = max(8, avail // (6 * H * act_itemsize))
    tr = int(min(max(8, block_rows), _round_up(BN, 8), tr_cap))
    if BN > 8 and tr >= BN:
        # Keep at least two grid steps so both v7x TensorCores get work.
        tr = _round_up(pl.cdiv(BN, 2), 8)
    if tr >= 256:
        tr = (tr // 256) * 256               # clean 256-wide MXU tile mapping
    else:
        tr = _round_up(tr, 8)
    grid = (pl.cdiv(BN, tr),)

    kernel = functools.partial(_self_output_kernel, eps=params["ln_eps"])

    def build(single_buffer_consts):
        const_kwargs = ({"pipeline_mode": pl.Buffered(1)}
                        if single_buffer_consts else {})
        w_buffers = 1 if single_buffer_consts else 2
        vmem_need = (6 * tr * H * act_itemsize      # x/res/out, double-buffered
                     + w_buffers * w_bytes          # resident weight
                     + 2 * vec_bytes + (1 << 20))   # vectors + slack
        vmem_limit = int(min(int(1.25 * vmem_need) + (4 << 20), budget))

        cost = pl.CostEstimate(
            flops=2 * BN * H * H + 10 * BN * H,
            transcendentals=BN,
            bytes_accessed=(3 * BN * H * act_itemsize   # x, residual, output
                            + w_bytes + 3 * H * 4),     # weight + vectors
        )

        return pl.pallas_call(
            kernel,
            out_shape=jax.ShapeDtypeStruct((BN, H), hidden_states.dtype),
            grid_spec=pltpu.PrefetchScalarGridSpec(
                num_scalar_prefetch=0,
                grid=grid,
                in_specs=[
                    pl.BlockSpec((tr, H), lambda i: (i, 0)),   # x tile
                    pl.BlockSpec((tr, H), lambda i: (i, 0)),   # residual tile
                    pl.BlockSpec((H, H), lambda i: (0, 0),     # W.T (resident)
                                 **const_kwargs),
                    pl.BlockSpec((3, H), lambda i: (0, 0),     # bias/gamma/beta
                                 **const_kwargs),
                ],
                out_specs=pl.BlockSpec((tr, H), lambda i: (i, 0)),
            ),
            compiler_params=pltpu.CompilerParams(
                dimension_semantics=("parallel",),
                vmem_limit_bytes=vmem_limit),
            cost_estimate=cost,
        )

    try:
        out2 = build(True)(x2, r2, w_t, vecs)
    except Exception:
        # Fallback: default double-buffering if Buffered(1) is rejected.
        out2 = build(False)(x2, r2, w_t, vecs)

    return out2.reshape(B, N, H)


def init_params(key, *, hidden_size, layer_norm_eps, hidden_dropout_prob=0.1):
    """Synthetic parameters in torch layout (dense_w is (out, in))."""
    k1, k2 = jax.random.split(key, 2)
    dense_w = 0.02 * jax.random.normal(k1, (hidden_size, hidden_size),
                                       dtype=jnp.float32)
    dense_b = 0.02 * jax.random.normal(k2, (hidden_size,), dtype=jnp.float32)
    ln_w = jnp.ones((hidden_size,), dtype=jnp.float32)
    ln_b = jnp.zeros((hidden_size,), dtype=jnp.float32)
    return {
        "dense_w": dense_w,
        "dense_b": dense_b,
        "ln_w": ln_w,
        "ln_b": ln_b,
        "ln_eps": layer_norm_eps,
        "dropout_prob": hidden_dropout_prob,   # unused in eval mode
    }


def prepare_params(params, *, weight_dtype=None):
    """One-time kernel-layout prep (hoisted out of the per-call path).

    - Transposes the dense weight once (no (H,H) copy per forward).
    - Optionally casts it (weight_dtype=jnp.bfloat16 -> bf16-native MXU path;
      the kernel casts the activation tile to match).
    - Fuses bias / ln gamma / ln beta into a single (3, H) f32 slab so the
      kernel sees one small constant input instead of three.
    """
    w_t = params["dense_w"].T
    if weight_dtype is not None:
        w_t = w_t.astype(weight_dtype)
    vecs = jnp.stack([params["dense_b"], params["ln_w"], params["ln_b"]],
                     axis=0).astype(jnp.float32)
    prepared = dict(params)
    prepared["dense_wt"] = w_t
    prepared["ln_vecs"] = vecs
    return prepared


def _reference(hidden_states, input_tensor, params):
    """Plain-JAX reference for sanity check."""
    h = hidden_states @ params["dense_w"].T + params["dense_b"]
    h = h + input_tensor
    mean = jnp.mean(h, axis=-1, keepdims=True)
    var = jnp.mean((h - mean) ** 2, axis=-1, keepdims=True)
    return (h - mean) * jax.lax.rsqrt(var + params["ln_eps"]) \
        * params["ln_w"] + params["ln_b"]


if __name__ == "__main__":
    # Small config consistent with the module's forward.
    B, N, H = 2, 8, 32
    LN_EPS = 1e-12

    key = jax.random.PRNGKey(0)
    kp, kx, kr = jax.random.split(key, 3)

    params = init_params(kp, hidden_size=H, layer_norm_eps=LN_EPS)
    hidden_states = jax.random.normal(kx, (B, N, H), dtype=jnp.float32)
    input_tensor = jax.random.normal(kr, (B, N, H), dtype=jnp.float32)

    ref = _reference(hidden_states, input_tensor, params)

    # f32 weight path: exact check against the reference.
    prepared = prepare_params(params)
    out = roberta_self_output_forward(hidden_states, input_tensor, prepared)
    out = jax.block_until_ready(out)
    assert out.shape == (B, N, H)
    assert jnp.allclose(out, ref, atol=1e-5, rtol=1e-5), "mismatch vs reference"

    # bf16 weight path: activations cast in-kernel, f32 accumulate/epilogue.
    prepared_bf16 = prepare_params(params, weight_dtype=jnp.bfloat16)
    out_bf16 = jax.block_until_ready(
        roberta_self_output_forward(hidden_states, input_tensor, prepared_bf16))
    assert bool(jnp.all(jnp.isfinite(out_bf16)))
    assert jnp.allclose(out_bf16, ref, atol=1e-1, rtol=1e-1), \
        "bf16 path mismatch vs reference"

    print("KERNEL_OK")
</pallas_src>

<mosaic_0001>
module attributes {stable_mosaic.version = 11 : i64} {
  func.func @_self_output_kernel(%arg0: i32, %arg1: memref<8x32xf32, #tpu.memory_space<vmem>>, %arg2: memref<8x32xf32, #tpu.memory_space<vmem>>, %arg3: memref<32x32xf32, #tpu.memory_space<vmem>>, %arg4: memref<3x32xf32, #tpu.memory_space<vmem>>, %arg5: memref<8x32xf32, #tpu.memory_space<vmem>>) attributes {dimension_semantics = [#tpu.dimension_semantics<parallel>], iteration_bounds = array<i64: 2>, scalar_prefetch = 0 : i64, scratch_operands = 0 : i64, tpu.core_type = #tpu.core_type<tc>, window_params = [{transform_indices = @transform_0, window_bounds = array<i64: 8, 32>}, {transform_indices = @transform_1, window_bounds = array<i64: 8, 32>}, {pipeline_mode = #tpu.pipeline_mode<synchronous>, transform_indices = @transform_2, window_bounds = array<i64: 32, 32>}, {pipeline_mode = #tpu.pipeline_mode<synchronous>, transform_indices = @transform_3, window_bounds = array<i64: 3, 32>}, {transform_indices = @transform_4, window_bounds = array<i64: 8, 32>}]} {
    %c0 = arith.constant 0 : index
    %c0_0 = arith.constant 0 : index
    %0 = vector.load %arg1[%c0, %c0_0] : memref<8x32xf32, #tpu.memory_space<vmem>>, vector<8x32xf32>
    %c0_1 = arith.constant 0 : index
    %c0_2 = arith.constant 0 : index
    %1 = vector.load %arg3[%c0_1, %c0_2] : memref<32x32xf32, #tpu.memory_space<vmem>>, vector<32x32xf32>
    %cst = arith.constant dense<0.000000e+00> : vector<8x32xf32>
    %2 = tpu.matmul %0, %1, %cst {dimension_numbers = #tpu.dot_dimension_numbers<[1], [0], [0], [1], [0, 0, 1, 1], [], []>} : vector<8x32xf32>, vector<32x32xf32>, vector<8x32xf32> -> vector<8x32xf32>
    %c0_3 = arith.constant 0 : index
    %c0_4 = arith.constant 0 : index
    %3 = vector.load %arg4[%c0_3, %c0_4] : memref<3x32xf32, #tpu.memory_space<vmem>>, vector<3x32xf32>
    %4 = vector.extract_strided_slice %3 {offsets = [0, 0], sizes = [1, 32], strides = [1, 1]} : vector<3x32xf32> to vector<1x32xf32>
    %5 = vector.extract_strided_slice %3 {offsets = [1, 0], sizes = [1, 32], strides = [1, 1]} : vector<3x32xf32> to vector<1x32xf32>
    %6 = vector.extract_strided_slice %3 {offsets = [2, 0], sizes = [1, 32], strides = [1, 1]} : vector<3x32xf32> to vector<1x32xf32>
    %c0_5 = arith.constant 0 : index
    %c0_6 = arith.constant 0 : index
    %7 = vector.load %arg2[%c0_5, %c0_6] : memref<8x32xf32, #tpu.memory_space<vmem>>, vector<8x32xf32>
    %8 = arith.addf %2, %7 : vector<8x32xf32>
    %9 = vector.broadcast %4 : vector<1x32xf32> to vector<8x32xf32>
    %10 = arith.addf %8, %9 : vector<8x32xf32>
    %cst_7 = arith.constant dense<0.000000e+00> : vector<8xf32>
    %11 = vector.multi_reduction <add>, %10, %cst_7 [1] : vector<8x32xf32> to vector<8xf32>
    %12 = vector.shape_cast %11 : vector<8xf32> to vector<8x1xf32>
    %cst_8 = arith.constant 3.200000e+01 : f32
    %13 = vector.broadcast %cst_8 : f32 to vector<8x1xf32>
    %14 = arith.divf %12, %13 : vector<8x1xf32>
    %15 = vector.broadcast %14 : vector<8x1xf32> to vector<8x32xf32>
    %16 = arith.subf %10, %15 : vector<8x32xf32>
    %17 = arith.mulf %16, %16 : vector<8x32xf32>
    %cst_9 = arith.constant dense<0.000000e+00> : vector<8xf32>
    %18 = vector.multi_reduction <add>, %17, %cst_9 [1] : vector<8x32xf32> to vector<8xf32>
    %19 = vector.shape_cast %18 : vector<8xf32> to vector<8x1xf32>
    %cst_10 = arith.constant 3.200000e+01 : f32
    %20 = vector.broadcast %cst_10 : f32 to vector<8x1xf32>
    %21 = arith.divf %19, %20 : vector<8x1xf32>
    %cst_11 = arith.constant 9.99999996E-13 : f32
    %22 = vector.broadcast %cst_11 : f32 to vector<8x1xf32>
    %23 = arith.addf %21, %22 : vector<8x1xf32>
    %24 = math.rsqrt %23 : vector<8x1xf32>
    %25 = vector.broadcast %24 : vector<8x1xf32> to vector<8x32xf32>
    %26 = arith.mulf %16, %25 : vector<8x32xf32>
    %27 = vector.broadcast %5 : vector<1x32xf32> to vector<8x32xf32>
    %28 = arith.mulf %26, %27 : vector<8x32xf32>
    %29 = vector.broadcast %6 : vector<1x32xf32> to vector<8x32xf32>
    %30 = arith.addf %28, %29 : vector<8x32xf32>
    %c0_12 = arith.constant 0 : index
    %c0_13 = arith.constant 0 : index
    %31 = vector.load %arg5[%c0_12, %c0_13] : memref<8x32xf32, #tpu.memory_space<vmem>>, vector<8x32xf32>
    tpu.vector_store %arg5[%c0_12, %c0_13], %30 {strides = array<i32>} : memref<8x32xf32, #tpu.memory_space<vmem>>, vector<8x32xf32>,
    return
  }
  func.func @transform_0(%arg0: i32) -> (i32, i32) {
    %c0_i32 = arith.constant 0 : i32
    %c0_i32_0 = arith.constant 0 : i32
    return %arg0, %c0_i32 : i32, i32
  }
  func.func @transform_1(%arg0: i32) -> (i32, i32) {
    %c0_i32 = arith.constant 0 : i32
    %c0_i32_0 = arith.constant 0 : i32
    return %arg0, %c0_i32 : i32, i32
  }
  func.func @transform_2(%arg0: i32) -> (i32, i32) {
    %c0_i32 = arith.constant 0 : i32
    %c0_i32_0 = arith.constant 0 : i32
    %c0_i32_1 = arith.constant 0 : i32
    return %c0_i32, %c0_i32_0 : i32, i32
  }
  func.func @transform_3(%arg0: i32) -> (i32, i32) {
    %c0_i32 = arith.constant 0 : i32
    %c0_i32_0 = arith.constant 0 : i32
    %c0_i32_1 = arith.constant 0 : i32
    return %c0_i32, %c0_i32_0 : i32, i32
  }
  func.func @transform_4(%arg0: i32) -> (i32, i32) {
    %c0_i32 = arith.constant 0 : i32
    %c0_i32_0 = arith.constant 0 : i32
    return %arg0, %c0_i32 : i32, i32
  }
}

module attributes {stable_mosaic.version = 11 : i64} {
  func.func @_self_output_kernel(%arg0: i32, %arg1: memref<8x32xf32, #tpu.memory_space<vmem>>, %arg2: memref<8x32xf32, #tpu.memory_space<vmem>>, %arg3: memref<32x32xf32, #tpu.memory_space<vmem>>, %arg4: memref<3x32xf32, #tpu.memory_space<vmem>>, %arg5: memref<8x32xf32, #tpu.memory_space<vmem>>) attributes {dimension_semantics = [#tpu.dimension_semantics<parallel>], iteration_bounds = array<i64: 2>, scalar_prefetch = 0 : i64, scratch_operands = 0 : i64, tpu.core_type = #tpu.core_type<tc>, window_params = [{transform_indices = @transform_0, window_bounds = array<i64: 8, 32>}, {transform_indices = @transform_1, window_bounds = array<i64: 8, 32>}, {pipeline_mode = #tpu.pipeline_mode<synchronous>, transform_indices = @transform_2, window_bounds = array<i64: 32, 32>}, {pipeline_mode = #tpu.pipeline_mode<synchronous>, transform_indices = @transform_3, window_bounds = array<i64: 3, 32>}, {transform_indices = @transform_4, window_bounds = array<i64: 8, 32>}]} {
    %c0 = arith.constant 0 : index
    %c0_0 = arith.constant 0 : index
    %0 = vector.load %arg1[%c0, %c0_0] : memref<8x32xf32, #tpu.memory_space<vmem>>, vector<8x32xf32>
    %c0_1 = arith.constant 0 : index
    %c0_2 = arith.constant 0 : index
    %1 = vector.load %arg3[%c0_1, %c0_2] : memref<32x32xf32, #tpu.memory_space<vmem>>, vector<32x32xf32>
    %cst = arith.constant dense<0.000000e+00> : vector<8x32xf32>
    %2 = tpu.matmul %0, %1, %cst {dimension_numbers = #tpu.dot_dimension_numbers<[1], [0], [0], [1], [0, 0, 1, 1], [], []>} : vector<8x32xf32>, vector<32x32xf32>, vector<8x32xf32> -> vector<8x32xf32>
    %c0_3 = arith.constant 0 : index
    %c0_4 = arith.constant 0 : index
    %3 = vector.load %arg4[%c0_3, %c0_4] : memref<3x32xf32, #tpu.memory_space<vmem>>, vector<3x32xf32>
    %4 = vector.extract_strided_slice %3 {offsets = [0, 0], sizes = [1, 32], strides = [1, 1]} : vector<3x32xf32> to vector<1x32xf32>
    %5 = vector.extract_strided_slice %3 {offsets = [1, 0], sizes = [1, 32], strides = [1, 1]} : vector<3x32xf32> to vector<1x32xf32>
    %6 = vector.extract_strided_slice %3 {offsets = [2, 0], sizes = [1, 32], strides = [1, 1]} : vector<3x32xf32> to vector<1x32xf32>
    %c0_5 = arith.constant 0 : index
    %c0_6 = arith.constant 0 : index
    %7 = vector.load %arg2[%c0_5, %c0_6] : memref<8x32xf32, #tpu.memory_space<vmem>>, vector<8x32xf32>
    %8 = arith.addf %2, %7 : vector<8x32xf32>
    %9 = vector.broadcast %4 : vector<1x32xf32> to vector<8x32xf32>
    %10 = arith.addf %8, %9 : vector<8x32xf32>
    %cst_7 = arith.constant dense<0.000000e+00> : vector<8xf32>
    %11 = vector.multi_reduction <add>, %10, %cst_7 [1] : vector<8x32xf32> to vector<8xf32>
    %12 = vector.shape_cast %11 : vector<8xf32> to vector<8x1xf32>
    %cst_8 = arith.constant 3.200000e+01 : f32
    %13 = vector.broadcast %cst_8 : f32 to vector<8x1xf32>
    %14 = arith.divf %12, %13 : vector<8x1xf32>
    %15 = vector.broadcast %14 : vector<8x1xf32> to vector<8x32xf32>
    %16 = arith.subf %10, %15 : vector<8x32xf32>
    %17 = arith.mulf %16, %16 : vector<8x32xf32>
    %cst_9 = arith.constant dense<0.000000e+00> : vector<8xf32>
    %18 = vector.multi_reduction <add>, %17, %cst_9 [1] : vector<8x32xf32> to vector<8xf32>
    %19 = vector.shape_cast %18 : vector<8xf32> to vector<8x1xf32>
    %cst_10 = arith.constant 3.200000e+01 : f32
    %20 = vector.broadcast %cst_10 : f32 to vector<8x1xf32>
    %21 = arith.divf %19, %20 : vector<8x1xf32>
    %cst_11 = arith.constant 9.99999996E-13 : f32
    %22 = vector.broadcast %cst_11 : f32 to vector<8x1xf32>
    %23 = arith.addf %21, %22 : vector<8x1xf32>
    %24 = math.rsqrt %23 : vector<8x1xf32>
    %25 = vector.broadcast %24 : vector<8x1xf32> to vector<8x32xf32>
    %26 = arith.mulf %16, %25 : vector<8x32xf32>
    %27 = vector.broadcast %5 : vector<1x32xf32> to vector<8x32xf32>
    %28 = arith.mulf %26, %27 : vector<8x32xf32>
    %29 = vector.broadcast %6 : vector<1x32xf32> to vector<8x32xf32>
    %30 = arith.addf %28, %29 : vector<8x32xf32>
    %c0_12 = arith.constant 0 : index
    %c0_13 = arith.constant 0 : index
    %31 = vector.load %arg5[%c0_12, %c0_13] : memref<8x32xf32, #tpu.memory_space<vmem>>, vector<8x32xf32>
    tpu.vector_store %arg5[%c0_12, %c0_13], %30 {strides = array<i32>} : memref<8x32xf32, #tpu.memory_space<vmem>>, vector<8x32xf32>,
    return
  }
  func.func @transform_0(%arg0: i32) -> (i32, i32) {
    %c0_i32 = arith.constant 0 : i32
    %c0_i32_0 = arith.constant 0 : i32
    return %arg0, %c0_i32 : i32, i32
  }
  func.func @transform_1(%arg0: i32) -> (i32, i32) {
    %c0_i32 = arith.constant 0 : i32
    %c0_i32_0 = arith.constant 0 : i32
    return %arg0, %c0_i32 : i32, i32
  }
  func.func @transform_2(%arg0: i32) -> (i32, i32) {
    %c0_i32 = arith.constant 0 : i32
    %c0_i32_0 = arith.constant 0 : i32
    %c0_i32_1 = arith.constant 0 : i32
    return %c0_i32, %c0_i32_0 : i32, i32
  }
  func.func @transform_3(%arg0: i32) -> (i32, i32) {
    %c0_i32 = arith.constant 0 : i32
    %c0_i32_0 = arith.constant 0 : i32
    %c0_i32_1 = arith.constant 0 : i32
    return %c0_i32, %c0_i32_0 : i32, i32
  }
  func.func @transform_4(%arg0: i32) -> (i32, i32) {
    %c0_i32 = arith.constant 0 : i32
    %c0_i32_0 = arith.constant 0 : i32
    return %arg0, %c0_i32 : i32, i32
  }
}

</mosaic_0001>

<llo_original>
// kernel: tpu_custom_call.1
$region0: #{tpu_custom_call.1}
  #allocation0 [shape = 'u32[]', space=smem, size = 0x4, offset = 0x4, fixed_abs, tag = 'smem constant byte address 0x4 - core index']
  #allocation1 [shape = 'u32[144,128]{1,0:T(1,128)}', space=vmem, size = 0x12000, scoped, tag = 'internal scratch']
  %s0 = inlined_call_operand.hbm [shape: f32[16,32], index: 0, kind: input, shape index: {}]
  %s1 = inlined_call_operand.hbm [shape: f32[16,32], index: 1, kind: input, shape index: {}]
  %s2 = inlined_call_operand.hbm [shape: f32[32,32], index: 2, kind: input, shape index: {}]
  %s3 = inlined_call_operand.vmem [shape: f32[3,32], index: 3, kind: input, shape index: {}]
  %s4 = inlined_call_operand.hbm [shape: f32[16,32], index: 4, kind: output, shape index: {}]
  %s5 = sld [smem:[#allocation0]]
  $region61: #{tpu_custom_call.1} parent=0
    _
  %s7 = ssub.s32 1, %s5
  %s8 = scalar_select 0, %s7, %s5
  $region1: #{tpu_custom_call.1} parent=0
    #allocation2 [shape = 'u8[8192]{0}', space=vmem, size = 0x2000, scoped, tag = 'input window, operand 0']
    #allocation3 [shape = 's32[2]{0}', space=sflag, size = 0x8, scoped, tag = 'scoped memory for tpu_custom_call.1']
    #allocation4 [shape = 's32[2]{0}', space=sflag, size = 0x8, scoped, tag = 'scoped memory for tpu_custom_call.1']
    #allocation5 [shape = 'u8[8192]{0}', space=vmem, size = 0x2000, scoped, tag = 'input window, operand 1']
    #allocation6 [shape = 's32[2]{0}', space=sflag, size = 0x8, scoped, tag = 'scoped memory for tpu_custom_call.1']
    #allocation7 [shape = 'u8[16384]{0}', space=vmem, size = 0x4000, scoped, tag = 'input window, operand 2, single buffered']
    #allocation8 [shape = 'u8[8192]{0}', space=vmem, size = 0x2000, scoped, tag = 'output window, operand 0']
    %9 = vsyncpa [#allocation3], 0
    %s10 = scalar_lea.sflag [#allocation3], 1
    %11 = vsyncpa %s10, 0
    %12 = vsyncpa [#allocation6], 0
    %s13 = scalar_lea.sflag [#allocation6], 1
    %14 = vsyncpa %s13, 0
    %15 = vsyncpa [#allocation4], 0
    %s16 = scalar_lea.sflag [#allocation4], 1
    %17 = vsyncpa %s16, 0
    loop: start=0, step=1, limit=4
    $region2: #{tpu_custom_call.1} parent=1 // loop_pre_header
      _
    $region3: #{tpu_custom_call.1} parent=1 // loop_header
      %s19 = sphi 0, %s23
      %p20 = scmp.ge.s32.totalorder %s19, 4
      %s29 = sphi 0, %s31
      %s32 = sphi 0, %s29
      %s33 = sphi 0, %s32
      %s49 = sphi 0, %s33
      %s55 = sphi 0, %s57
      %s58 = sphi 0, %s55
      %s59 = sphi 0, %s58
      %s75 = sphi 0, %s59
      %s79 = sphi 0, %s79
      %s81 = sphi 0, %s79
      %s82 = sphi 0, %s81
      %s96 = sphi 0, %s82
      %s100 = sphi 0, %s100
      %s102 = sphi 0, %s100
      %s103 = sphi 0, %s102
      %s117 = sphi 0, %s103
      %s123 = sphi 0, %s125
      %s126 = sphi 0, %s123
      %s127 = sphi 0, %s126
      %s143 = sphi 0, %s127
    $region4: #{tpu_custom_call.1} parent=1 // loop_header_branch
      %22 = sbr.rel (%p20) target = $region8
    $region5: #{tpu_custom_call.1} parent=1 // loop_body
      %s24 = ssub.s32 %s19, 1
      %s25 = ssub.s32 %s19, 2
      %s26 = sadd.s32 %s19, 1
      %s27 = ssub.s32 %s19, %s26
      %p28 = scmp.eq.s32.totalorder %s27, 0
      %s30 = sadd.s32 %s29, 1
      %s31 = scalar_select %p28, %s29, %s30
      %p34 = pneg %p28
      %p35 = scmp.eq.s32.totalorder %s19, 1
      %p36 = por %p34, %p35
      %p37 = scmp.ne.s32.totalorder %s29, %s32
      %p38 = scmp.eq.s32.totalorder %s19, 0
      %p39 = por %p37, %p38
      %p40 = scmp.ne.s32.totalorder %s29, %s32
      %p41 = scmp.eq.s32.totalorder %s24, 1
      %p42 = por %p40, %p41
      %p43 = scmp.ne.s32.totalorder %s32, %s33
      %p44 = scmp.eq.s32.totalorder %s24, 0
      %p45 = por %p43, %p44
      %p46 = scmp.ne.s32.totalorder %s32, %s33
      %p47 = scmp.eq.s32.totalorder %s25, 1
      %p48 = por %p46, %p47
      %p50 = scmp.ne.s32.totalorder %s33, %s49
      %p51 = scmp.eq.s32.totalorder %s25, 0
      %p52 = por %p50, %p51
      %s53 = ssub.s32 %s19, %s26
      %p54 = scmp.eq.s32.totalorder %s53, 0
      %s56 = sadd.s32 %s55, 1
      %s57 = scalar_select %p54, %s55, %s56
      %p60 = pneg %p54
      %p61 = scmp.eq.s32.totalorder %s19, 1
      %p62 = por %p60, %p61
      %p63 = scmp.ne.s32.totalorder %s55, %s58
      %p64 = scmp.eq.s32.totalorder %s19, 0
      %p65 = por %p63, %p64
      %p66 = scmp.ne.s32.totalorder %s55, %s58
      %p67 = scmp.eq.s32.totalorder %s24, 1
      %p68 = por %p66, %p67
      %p69 = scmp.ne.s32.totalorder %s58, %s59
      %p70 = scmp.eq.s32.totalorder %s24, 0
      %p71 = por %p69, %p70
      %p72 = scmp.ne.s32.totalorder %s58, %s59
      %p73 = scmp.eq.s32.totalorder %s25, 1
      %p74 = por %p72, %p73
      %p76 = scmp.ne.s32.totalorder %s59, %s75
      %p77 = scmp.eq.s32.totalorder %s25, 0
      %p78 = por %p76, %p77
      %s80 = sadd.s32 %s79, 1
      %p83 = scmp.eq.s32.totalorder %s19, 1
      %p84 = scmp.ne.s32.totalorder %s79, %s81
      %p85 = scmp.eq.s32.totalorder %s19, 0
      %p86 = por %p84, %p85
      %p87 = scmp.ne.s32.totalorder %s79, %s81
      %p88 = scmp.eq.s32.totalorder %s24, 1
      %p89 = por %p87, %p88
      %p90 = scmp.ne.s32.totalorder %s81, %s82
      %p91 = scmp.eq.s32.totalorder %s24, 0
      %p92 = por %p90, %p91
      %p93 = scmp.ne.s32.totalorder %s81, %s82
      %p94 = scmp.eq.s32.totalorder %s25, 1
      %p95 = por %p93, %p94
      %p97 = scmp.ne.s32.totalorder %s82, %s96
      %p98 = scmp.eq.s32.totalorder %s25, 0
      %p99 = por %p97, %p98
      %s101 = sadd.s32 %s100, 1
      %p104 = scmp.eq.s32.totalorder %s19, 1
      %p105 = scmp.ne.s32.totalorder %s100, %s102
      %p106 = scmp.eq.s32.totalorder %s19, 0
      %p107 = por %p105, %p106
      %p108 = scmp.ne.s32.totalorder %s100, %s102
      %p109 = scmp.eq.s32.totalorder %s24, 1
      %p110 = por %p108, %p109
      %p111 = scmp.ne.s32.totalorder %s102, %s103
      %p112 = scmp.eq.s32.totalorder %s24, 0
      %p113 = por %p111, %p112
      %p114 = scmp.ne.s32.totalorder %s102, %s103
      %p115 = scmp.eq.s32.totalorder %s25, 1
      %p116 = por %p114, %p115
      %p118 = scmp.ne.s32.totalorder %s103, %s117
      %p119 = scmp.eq.s32.totalorder %s25, 0
      %p120 = por %p118, %p119
      %s121 = ssub.s32 %s19, %s26
      %p122 = scmp.eq.s32.totalorder %s121, 0
      %s124 = sadd.s32 %s123, 1
      %s125 = scalar_select %p122, %s123, %s124
      %p128 = pneg %p122
      %p129 = scmp.eq.s32.totalorder %s19, 1
      %p130 = por %p128, %p129
      %p131 = scmp.ne.s32.totalorder %s123, %s126
      %p132 = scmp.eq.s32.totalorder %s19, 0
      %p133 = por %p131, %p132
      %p134 = scmp.ne.s32.totalorder %s123, %s126
      %p135 = scmp.eq.s32.totalorder %s24, 1
      %p136 = por %p134, %p135
      %p137 = scmp.ne.s32.totalorder %s126, %s127
      %p138 = scmp.eq.s32.totalorder %s24, 0
      %p139 = por %p137, %p138
      %p140 = scmp.ne.s32.totalorder %s126, %s127
      %p141 = scmp.eq.s32.totalorder %s25, 1
      %p142 = por %p140, %p141
      %p144 = scmp.ne.s32.totalorder %s127, %s143
      %p145 = scmp.eq.s32.totalorder %s25, 0
      %p146 = por %p144, %p145
      %p147 = scmp.le.s32.totalorder 1, %s19
      %p148 = scmp.lt.s32.totalorder %s19, 3
      %p149 = pnand %p147, %p148
      %p150 = pneg %p149
      // Predicated region
      $region9: #{tpu_custom_call.1} parent=5 // pred_check
        _
      $region10: #{tpu_custom_call.1} parent=5 // pred_check_branch
        %152 = sbr.rel (%p149) target = $region12
      $region11: #{tpu_custom_call.1} parent=5 // pred_region
        %s153 = ssub.s32 %s19, 1
        // Predicated region
        $region13: #{tpu_custom_call.1} parent=11 // pred_check
          %p154 = pneg %p92
        $region14: #{tpu_custom_call.1} parent=11 // pred_check_branch
          %156 = sbr.rel (%p154) target = $region16
        $region15: #{tpu_custom_call.1} parent=11 // pred_region
          %s158 = ssub.s32 512, 512
          %159 = vsyncadd [#allocation6], %s158
          %s160 = sshll.u32 [#allocation7], 4
          %s161 = int_to_ptr.vmem [resolvable:$true] %s160
          %166 = dma.hbm_to_vmem [thread:$0]  %s2, 512, %s161, [#allocation6], 128, 128, 8
        $region16: #{tpu_custom_call.1} parent=11 // pred_fallthru
          _
        // Predicated region
        $region17: #{tpu_custom_call.1} parent=11 // pred_check
          %p167 = pneg %p113
        $region18: #{tpu_custom_call.1} parent=11 // pred_check_branch
          %169 = sbr.rel (%p167) target = $region20
        $region19: #{tpu_custom_call.1} parent=11 // pred_region
          _
        $region20: #{tpu_custom_call.1} parent=11 // pred_fallthru
          _
      $region12: #{tpu_custom_call.1} parent=5 // pred_fallthru
        _
      %p170 = scmp.lt.s32.totalorder %s19, 2
      // Predicated region
      $region21: #{tpu_custom_call.1} parent=5 // pred_check
        %p171 = pneg %p170
      $region22: #{tpu_custom_call.1} parent=5 // pred_check_branch
        %173 = sbr.rel (%p171) target = $region24
      $region23: #{tpu_custom_call.1} parent=5 // pred_region
        // Predicated region
        $region25: #{tpu_custom_call.1} parent=23 // pred_check
          %p174 = pneg %p39
        $region26: #{tpu_custom_call.1} parent=23 // pred_check_branch
          %176 = sbr.rel (%p174) target = $region28
        $region27: #{tpu_custom_call.1} parent=23 // pred_region
          %s177 = sand.u32 %s29, 1
          %s178 = scalar_lea.sflag [#allocation3], %s177
          %s179 = sand.u32 %s29, 1
          %s180 = smul.addr %s179, 8
          %s181 = scalar_lea.vmem [#allocation2], %s180
          %s183 = ssub.s32 128, 128
          %184 = vsyncadd %s178, %s183
          %s185 = smul.addr %s19, 128
          %s186 = scalar_lea.hbm %s0, %s185
          %s188 = sshll.u32 %s181, 4
          %s189 = int_to_ptr.vmem [resolvable:$true] %s188
          %191 = dma.hbm_to_vmem [thread:$0]  %s186, 128, %s189, %s178
        $region28: #{tpu_custom_call.1} parent=23 // pred_fallthru
          _
        // Predicated region
        $region29: #{tpu_custom_call.1} parent=23 // pred_check
          %p192 = pneg %p65
        $region30: #{tpu_custom_call.1} parent=23 // pred_check_branch
          %194 = sbr.rel (%p192) target = $region32
        $region31: #{tpu_custom_call.1} parent=23 // pred_region
          %s195 = sand.u32 %s19, 1
          %s196 = scalar_lea.sflag [#allocation6], %s195
          %s197 = sand.u32 %s55, 1
          %s198 = smul.addr %s197, 8
          %s199 = scalar_lea.vmem [#allocation5], %s198
          %s201 = ssub.s32 128, 128
          %202 = vsyncadd %s196, %s201
          %s203 = smul.addr %s19, 128
          %s204 = scalar_lea.hbm %s1, %s203
          %s206 = sshll.u32 %s199, 4
          %s207 = int_to_ptr.vmem [resolvable:$true] %s206
          %209 = dma.hbm_to_vmem [thread:$0]  %s204, 128, %s207, %s196
        $region32: #{tpu_custom_call.1} parent=23 // pred_fallthru
          _
      $region24: #{tpu_custom_call.1} parent=5 // pred_fallthru
        _
      %p210 = scmp.le.s32.totalorder 1, %s19
      %p211 = scmp.lt.s32.totalorder %s19, 3
      %p212 = pnand %p210, %p211
      %p213 = pneg %p212
      // Predicated region
      $region33: #{tpu_custom_call.1} parent=5 // pred_check
        _
      $region34: #{tpu_custom_call.1} parent=5 // pred_check_branch
        %215 = sbr.rel (%p212) target = $region36
      $region35: #{tpu_custom_call.1} parent=5 // pred_region
        %s216 = ssub.s32 %s19, 1
        %s217 = sand.u32 %s32, 1
        %s218 = scalar_lea.sflag [#allocation3], %s217
        %s219 = sand.u32 %s32, 1
        %s220 = smul.addr %s219, 8
        %s221 = scalar_lea.vmem [#allocation2], %s220
        // Predicated region
        $region37: #{tpu_custom_call.1} parent=35 // pred_check
          %p222 = pneg %p45
        $region38: #{tpu_custom_call.1} parent=35 // pred_check_branch
          %224 = sbr.rel (%p222) target = $region40
        $region39: #{tpu_custom_call.1} parent=35 // pred_region
          %225 = dma.done %s218, 128
        $region40: #{tpu_custom_call.1} parent=35 // pred_fallthru
          _
        %s226 = sand.u32 %s24, 1
        %s227 = scalar_lea.sflag [#allocation6], %s226
        %s228 = sand.u32 %s58, 1
        %s229 = smul.addr %s228, 8
        %s230 = scalar_lea.vmem [#allocation5], %s229
        // Predicated region
        $region41: #{tpu_custom_call.1} parent=35 // pred_check
          %p231 = pneg %p71
        $region42: #{tpu_custom_call.1} parent=35 // pred_check_branch
          %233 = sbr.rel (%p231) target = $region44
        $region43: #{tpu_custom_call.1} parent=35 // pred_region
          %234 = dma.done %s227, 128
        $region44: #{tpu_custom_call.1} parent=35 // pred_fallthru
          _
        // Predicated region
        $region45: #{tpu_custom_call.1} parent=35 // pred_check
          %p235 = pneg %p92
        $region46: #{tpu_custom_call.1} parent=35 // pred_check_branch
          %237 = sbr.rel (%p235) target = $region48
        $region47: #{tpu_custom_call.1} parent=35 // pred_region
          %238 = dma.done [#allocation6], 512
        $region48: #{tpu_custom_call.1} parent=35 // pred_fallthru
          _
        %s239 = sand.u32 %s32, 1
        %s240 = scalar_lea.sflag [#allocation3], %s239
        %s241 = sand.u32 %s32, 1
        %s242 = smul.addr %s241, 8
        %s243 = scalar_lea.vmem [#allocation2], %s242
        %p244 = pneg %p45
        %p245 = pneg %p42
        %s246 = sand.u32 %s24, 1
        %s247 = scalar_lea.sflag [#allocation6], %s246
        %s248 = sand.u32 %s58, 1
        %s249 = smul.addr %s248, 8
        %s250 = scalar_lea.vmem [#allocation5], %s249
        %p251 = pneg %p71
        %p252 = pneg %p68
        %p253 = pneg %p92
        %p254 = pneg %p89
        %p255 = pneg %p113
        %p256 = pneg %p110
        %p257 = pneg %p139
        %p258 = pneg %p136
        %s259 = sand.u32 %s126, 1
        %s260 = scalar_lea.sflag [#allocation4], %s259
        %s261 = sand.u32 %s126, 1
        %s262 = smul.addr %s261, 8
        %s263 = scalar_lea.vmem [#allocation8], %s262
        %v264 = vld [vmem:[%s221] sm:$0xff]
        %v265 = vld [vmem:[#allocation7] sm:$0xff]
        %v266 = vld [vmem:[#allocation7 + $0x8] sm:$0xff]
        %v267 = vld [vmem:[#allocation7 + $0x10] sm:$0xff]
        %v268 = vld [vmem:[#allocation7 + $0x18] sm:$0xff]
        %v269 = vld [vmem:[%s3] sm:$0x7]
        %v270 = vld [vmem:[%s230] sm:$0xff]
        %vm271 = vcmask 261120
        %v273 = vsel %vm271, %v264, 0
        %275 = vmatprep.subr.mxu0 0.0
        %276 = vmatpush1.msra.mxu0 %v265
        %277 = vmatprep.subr.mxu0 0.0
        %278 = vmatpush1.msra.mxu0 %v266
        %279 = vmatprep.subr.mxu0 0.0
        %280 = vmatpush1.msra.mxu0 %v267
        %281 = vmatprep.subr.mxu0 0.0
        %282 = vmatpush1.msra.mxu0 %v268
        %283 = vmatprep.subr.mxu0 0.0
        %284 = vmatpush1.msra.mxu0 0.0
        %285 = vmatprep.subr.mxu0 0.0
        %286 = vmatpush1.msra.mxu0 0.0
        %287 = vmatprep.subr.mxu0 0.0
        %288 = vmatpush1.msra.mxu0 0.0
        %289 = vmatprep.subr.mxu0 0.0
        %290 = vmatpush1.msra.mxu0 0.0
        %291 = vmatprep.subr.mxu0 0.0
        %292 = vmatpush1.msra.mxu0 0.0
        %293 = vmatprep.subr.mxu0 0.0
        %294 = vmatpush1.msra.mxu0 0.0
        %295 = vmatprep.subr.mxu0 0.0
        %296 = vmatpush1.msra.mxu0 0.0
        %297 = vmatprep.subr.mxu0 0.0
        %298 = vmatpush1.msra.mxu0 0.0
        %299 = vmatprep.subr.mxu0 0.0
        %300 = vmatpush1.msra.mxu0 0.0
        %301 = vmatprep.subr.mxu0 0.0
        %302 = vmatpush1.msra.mxu0 0.0
        %303 = vmatprep.subr.mxu0 0.0
        %304 = vmatpush1.msra.mxu0 0.0
        %305 = vmatprep.subr.mxu0 0.0
        %306 = vmatpush1.msra.mxu0 0.0
        %307 = vmatprep.subr.mxu0 0.0
        %308 = vmatpush1.msra.mxu0 0.0
        %309 = vmatprep.subr.mxu0 0.0
        %310 = vmatpush1.msra.mxu0 0.0
        %311 = vmatprep.subr.mxu0 0.0
        %312 = vmatpush1.msra.mxu0 0.0
        %313 = vmatprep.subr.mxu0 0.0
        %314 = vmatpush1.msra.mxu0 0.0
        %315 = vmatprep.subr.mxu0 0.0
        %316 = vmatpush1.msra.mxu0 0.0
        %317 = vmatprep.subr.mxu0 0.0
        %318 = vmatpush1.msra.mxu0 0.0
        %319 = vmatprep.subr.mxu0 0.0
        %320 = vmatpush1.msra.mxu0 0.0
        %321 = vmatprep.subr.mxu0 0.0
        %322 = vmatpush1.msra.mxu0 0.0
        %323 = vmatprep.subr.mxu0 0.0
        %324 = vmatpush1.msra.mxu0 0.0
        %325 = vmatprep.subr.mxu0 0.0
        %326 = vmatpush1.msra.mxu0 0.0
        %327 = vmatprep.subr.mxu0 0.0
        %328 = vmatpush1.msra.mxu0 0.0
        %329 = vmatprep.subr.mxu0 0.0
        %330 = vmatpush1.msra.mxu0 0.0
        %331 = vmatprep.subr.mxu0 0.0
        %332 = vmatpush1.msra.mxu0 0.0
        %333 = vmatprep.subr.mxu0 0.0
        %334 = vmatpush1.msra.mxu0 0.0
        %335 = vmatprep.subr.mxu0 0.0
        %336 = vmatpush1.msra.mxu0 0.0
        %337 = vmatprep.subr.mxu0 0.0
        %338 = vmatpush1.msra.mxu0 0.0
        %339 = vmatprep.mubr.f32.mxu0 0.0
        %340 = vmatmul.mubr.f32.gmra.mrb[0].mxu0 %v273
        %v341 = vpop.f32.mrb[0].mxu0
        %v342 = vadd.f32 %v270, %v341
        %v343 = vpop.f32.mrb[0].mxu0
        %344 = vdwg.mxu0
        %v345 = vlaneseq
        %v346 = vshrl.u32 %v345, 7
        %v347 = vsub.s32 0, %v346
        %v348 = vrot.slane %v269, %v347
        %v349 = vadd.f32 %v342, %v348
        %v350 = vsel %vm271, %v349, 0.0
        %351 = vadd.xlane.f32.xlu0 %v350
        %v352 = vpop.xlane.xlu0 %351
        %v353 = vrcp.pop 32.0
        %v354 = vmul.f32 %v352, %v353
        %v355 = vsub.f32 %v349, %v354
        %v356 = vmul.f32 %v355, %v355
        %v357 = vsel %vm271, %v356, 0.0
        %358 = vadd.xlane.f32.xlu0 %v357
        %v359 = vpop.xlane.xlu0 %358
        %v360 = vmul.f32 %v359, %v353
        %v361 = vadd.f32 %v360, 1e-12
        %v362 = vrsqrt.pop %v361
        %v363 = vmul.f32 %v355, %v362
        %v364 = vlaneseq
        %v365 = vshrl.u32 %v364, 7
        %v366 = vsub.s32 1, %v365
        %v367 = vrot.slane %v269, %v366
        %v368 = vmul.f32 %v363, %v367
        %v369 = vlaneseq
        %v370 = vshrl.u32 %v369, 7
        %v371 = vsub.s32 2, %v370
        %v372 = vrot.slane %v269, %v371
        %v373 = vadd.f32 %v368, %v372
        %374 = vst.msk [vmem:[%s263] sm:$0xff] %vm271, %v373
        %s375 = sand.u32 %s126, 1
        %s376 = scalar_lea.sflag [#allocation4], %s375
        %s377 = sand.u32 %s126, 1
        %s378 = smul.addr %s377, 8
        %s379 = scalar_lea.vmem [#allocation8], %s378
        // Predicated region
        $region49: #{tpu_custom_call.1} parent=35 // pred_check
          %p380 = pneg %p136
        $region50: #{tpu_custom_call.1} parent=35 // pred_check_branch
          %382 = sbr.rel (%p380) target = $region52
        $region51: #{tpu_custom_call.1} parent=35 // pred_region
          %s384 = ssub.s32 128, 128
          %385 = vsyncadd %s376, %s384
          %s386 = smul.addr %s24, 128
          %s387 = scalar_lea.hbm %s4, %s386
          %s389 = sshll.u32 %s379, 4
          %s390 = int_to_ptr.vmem [resolvable:$true] %s389
          %392 = dma.vmem_to_hbm [thread:$0]  %s390, 128, %s387, %s376
        $region52: #{tpu_custom_call.1} parent=35 // pred_fallthru
          _
      $region36: #{tpu_custom_call.1} parent=5 // pred_fallthru
        _
      %p393 = scmp.le.s32.totalorder 2, %s19
      // Predicated region
      $region53: #{tpu_custom_call.1} parent=5 // pred_check
        %p394 = pneg %p393
      $region54: #{tpu_custom_call.1} parent=5 // pred_check_branch
        %396 = sbr.rel (%p394) target = $region56
      $region55: #{tpu_custom_call.1} parent=5 // pred_region
        %s397 = ssub.s32 %s19, 2
        // Predicated region
        $region57: #{tpu_custom_call.1} parent=55 // pred_check
          %p398 = pneg %p142
        $region58: #{tpu_custom_call.1} parent=55 // pred_check_branch
          %400 = sbr.rel (%p398) target = $region60
        $region59: #{tpu_custom_call.1} parent=55 // pred_region
          %s401 = sand.u32 %s127, 1
          %s402 = scalar_lea.sflag [#allocation4], %s401
          %s403 = sand.u32 %s127, 1
          %s404 = smul.addr %s403, 8
          %s405 = scalar_lea.vmem [#allocation8], %s404
          %406 = dma.done %s402, 128
        $region60: #{tpu_custom_call.1} parent=55 // pred_fallthru
          _
      $region56: #{tpu_custom_call.1} parent=5 // pred_fallthru
        _
    $region6: #{tpu_custom_call.1} parent=1 // loop_footer
      %s23 = sadd.s32 1, %s19
    $region7: #{tpu_custom_call.1} parent=1 // loop_footer_branch
      %18 = sbr.rel target = $region3
    $region8: #{tpu_custom_call.1} parent=1 // loop_exit
      _
    %407 = vsyncpa [#allocation3], 1
    %s408 = scalar_lea.sflag [#allocation3], 1
    %409 = vsyncpa %s408, 1
    %410 = vsyncpa [#allocation6], 1
    %s411 = scalar_lea.sflag [#allocation6], 1
    %412 = vsyncpa %s411, 1
    %413 = vsyncpa [#allocation4], 1
    %s414 = scalar_lea.sflag [#allocation4], 1
    %415 = vsyncpa %s414, 1

// kernel: tpu_custom_call.1
$region0: #{tpu_custom_call.1}
  #allocation0 [shape = 'u32[]', space=smem, size = 0x4, offset = 0x4, fixed_abs, tag = 'smem constant byte address 0x4 - core index']
  #allocation1 [shape = 'u32[144,128]{1,0:T(1,128)}', space=vmem, size = 0x12000, scoped, tag = 'internal scratch']
  %s0 = inlined_call_operand.hbm [shape: f32[16,32], index: 0, kind: input, shape index: {}]
  %s1 = inlined_call_operand.hbm [shape: f32[16,32], index: 1, kind: input, shape index: {}]
  %s2 = inlined_call_operand.hbm [shape: f32[32,32], index: 2, kind: input, shape index: {}]
  %s3 = inlined_call_operand.vmem [shape: f32[3,32], index: 3, kind: input, shape index: {}]
  %s4 = inlined_call_operand.hbm [shape: f32[16,32], index: 4, kind: output, shape index: {}]
  %s5 = sld [smem:[#allocation0]]
  $region61: #{tpu_custom_call.1} parent=0
    _
  %s7 = ssub.s32 1, %s5
  %s8 = scalar_select 0, %s7, %s5
  $region1: #{tpu_custom_call.1} parent=0
    #allocation2 [shape = 'u8[8192]{0}', space=vmem, size = 0x2000, scoped, tag = 'input window, operand 0']
    #allocation3 [shape = 's32[2]{0}', space=sflag, size = 0x8, scoped, tag = 'scoped memory for tpu_custom_call.1']
    #allocation4 [shape = 's32[2]{0}', space=sflag, size = 0x8, scoped, tag = 'scoped memory for tpu_custom_call.1']
    #allocation5 [shape = 'u8[8192]{0}', space=vmem, size = 0x2000, scoped, tag = 'input window, operand 1']
    #allocation6 [shape = 's32[2]{0}', space=sflag, size = 0x8, scoped, tag = 'scoped memory for tpu_custom_call.1']
    #allocation7 [shape = 'u8[16384]{0}', space=vmem, size = 0x4000, scoped, tag = 'input window, operand 2, single buffered']
    #allocation8 [shape = 'u8[8192]{0}', space=vmem, size = 0x2000, scoped, tag = 'output window, operand 0']
    %9 = vsyncpa [#allocation3], 0
    %s10 = scalar_lea.sflag [#allocation3], 1
    %11 = vsyncpa %s10, 0
    %12 = vsyncpa [#allocation6], 0
    %s13 = scalar_lea.sflag [#allocation6], 1
    %14 = vsyncpa %s13, 0
    %15 = vsyncpa [#allocation4], 0
    %s16 = scalar_lea.sflag [#allocation4], 1
    %17 = vsyncpa %s16, 0
    loop: start=0, step=1, limit=4
    $region2: #{tpu_custom_call.1} parent=1 // loop_pre_header
      _
    $region3: #{tpu_custom_call.1} parent=1 // loop_header
      %s19 = sphi 0, %s23
      %p20 = scmp.ge.s32.totalorder %s19, 4
      %s29 = sphi 0, %s31
      %s32 = sphi 0, %s29
      %s33 = sphi 0, %s32
      %s49 = sphi 0, %s33
      %s55 = sphi 0, %s57
      %s58 = sphi 0, %s55
      %s59 = sphi 0, %s58
      %s75 = sphi 0, %s59
      %s79 = sphi 0, %s79
      %s81 = sphi 0, %s79
      %s82 = sphi 0, %s81
      %s96 = sphi 0, %s82
      %s100 = sphi 0, %s100
      %s102 = sphi 0, %s100
      %s103 = sphi 0, %s102
      %s117 = sphi 0, %s103
      %s123 = sphi 0, %s125
      %s126 = sphi 0, %s123
      %s127 = sphi 0, %s126
      %s143 = sphi 0, %s127
    $region4: #{tpu_custom_call.1} parent=1 // loop_header_branch
      %22 = sbr.rel (%p20) target = $region8
    $region5: #{tpu_custom_call.1} parent=1 // loop_body
      %s24 = ssub.s32 %s19, 1
      %s25 = ssub.s32 %s19, 2
      %s26 = sadd.s32 %s19, 1
      %s27 = ssub.s32 %s19, %s26
      %p28 = scmp.eq.s32.totalorder %s27, 0
      %s30 = sadd.s32 %s29, 1
      %s31 = scalar_select %p28, %s29, %s30
      %p34 = pneg %p28
      %p35 = scmp.eq.s32.totalorder %s19, 1
      %p36 = por %p34, %p35
      %p37 = scmp.ne.s32.totalorder %s29, %s32
      %p38 = scmp.eq.s32.totalorder %s19, 0
      %p39 = por %p37, %p38
      %p40 = scmp.ne.s32.totalorder %s29, %s32
      %p41 = scmp.eq.s32.totalorder %s24, 1
      %p42 = por %p40, %p41
      %p43 = scmp.ne.s32.totalorder %s32, %s33
      %p44 = scmp.eq.s32.totalorder %s24, 0
      %p45 = por %p43, %p44
      %p46 = scmp.ne.s32.totalorder %s32, %s33
      %p47 = scmp.eq.s32.totalorder %s25, 1
      %p48 = por %p46, %p47
      %p50 = scmp.ne.s32.totalorder %s33, %s49
      %p51 = scmp.eq.s32.totalorder %s25, 0
      %p52 = por %p50, %p51
      %s53 = ssub.s32 %s19, %s26
      %p54 = scmp.eq.s32.totalorder %s53, 0
      %s56 = sadd.s32 %s55, 1
      %s57 = scalar_select %p54, %s55, %s56
      %p60 = pneg %p54
      %p61 = scmp.eq.s32.totalorder %s19, 1
      %p62 = por %p60, %p61
      %p63 = scmp.ne.s32.totalorder %s55, %s58
      %p64 = scmp.eq.s32.totalorder %s19, 0
      %p65 = por %p63, %p64
      %p66 = scmp.ne.s32.totalorder %s55, %s58
      %p67 = scmp.eq.s32.totalorder %s24, 1
      %p68 = por %p66, %p67
      %p69 = scmp.ne.s32.totalorder %s58, %s59
      %p70 = scmp.eq.s32.totalorder %s24, 0
      %p71 = por %p69, %p70
      %p72 = scmp.ne.s32.totalorder %s58, %s59
      %p73 = scmp.eq.s32.totalorder %s25, 1
      %p74 = por %p72, %p73
      %p76 = scmp.ne.s32.totalorder %s59, %s75
      %p77 = scmp.eq.s32.totalorder %s25, 0
      %p78 = por %p76, %p77
      %s80 = sadd.s32 %s79, 1
      %p83 = scmp.eq.s32.totalorder %s19, 1
      %p84 = scmp.ne.s32.totalorder %s79, %s81
      %p85 = scmp.eq.s32.totalorder %s19, 0
      %p86 = por %p84, %p85
      %p87 = scmp.ne.s32.totalorder %s79, %s81
      %p88 = scmp.eq.s32.totalorder %s24, 1
      %p89 = por %p87, %p88
      %p90 = scmp.ne.s32.totalorder %s81, %s82
      %p91 = scmp.eq.s32.totalorder %s24, 0
      %p92 = por %p90, %p91
      %p93 = scmp.ne.s32.totalorder %s81, %s82
      %p94 = scmp.eq.s32.totalorder %s25, 1
      %p95 = por %p93, %p94
      %p97 = scmp.ne.s32.totalorder %s82, %s96
      %p98 = scmp.eq.s32.totalorder %s25, 0
      %p99 = por %p97, %p98
      %s101 = sadd.s32 %s100, 1
      %p104 = scmp.eq.s32.totalorder %s19, 1
      %p105 = scmp.ne.s32.totalorder %s100, %s102
      %p106 = scmp.eq.s32.totalorder %s19, 0
      %p107 = por %p105, %p106
      %p108 = scmp.ne.s32.totalorder %s100, %s102
      %p109 = scmp.eq.s32.totalorder %s24, 1
      %p110 = por %p108, %p109
      %p111 = scmp.ne.s32.totalorder %s102, %s103
      %p112 = scmp.eq.s32.totalorder %s24, 0
      %p113 = por %p111, %p112
      %p114 = scmp.ne.s32.totalorder %s102, %s103
      %p115 = scmp.eq.s32.totalorder %s25, 1
      %p116 = por %p114, %p115
      %p118 = scmp.ne.s32.totalorder %s103, %s117
      %p119 = scmp.eq.s32.totalorder %s25, 0
      %p120 = por %p118, %p119
      %s121 = ssub.s32 %s19, %s26
      %p122 = scmp.eq.s32.totalorder %s121, 0
      %s124 = sadd.s32 %s123, 1
      %s125 = scalar_select %p122, %s123, %s124
      %p128 = pneg %p122
      %p129 = scmp.eq.s32.totalorder %s19, 1
      %p130 = por %p128, %p129
      %p131 = scmp.ne.s32.totalorder %s123, %s126
      %p132 = scmp.eq.s32.totalorder %s19, 0
      %p133 = por %p131, %p132
      %p134 = scmp.ne.s32.totalorder %s123, %s126
      %p135 = scmp.eq.s32.totalorder %s24, 1
      %p136 = por %p134, %p135
      %p137 = scmp.ne.s32.totalorder %s126, %s127
      %p138 = scmp.eq.s32.totalorder %s24, 0
      %p139 = por %p137, %p138
      %p140 = scmp.ne.s32.totalorder %s126, %s127
      %p141 = scmp.eq.s32.totalorder %s25, 1
      %p142 = por %p140, %p141
      %p144 = scmp.ne.s32.totalorder %s127, %s143
      %p145 = scmp.eq.s32.totalorder %s25, 0
      %p146 = por %p144, %p145
      %p147 = scmp.le.s32.totalorder 1, %s19
      %p148 = scmp.lt.s32.totalorder %s19, 3
      %p149 = pnand %p147, %p148
      %p150 = pneg %p149
      // Predicated region
      $region9: #{tpu_custom_call.1} parent=5 // pred_check
        _
      $region10: #{tpu_custom_call.1} parent=5 // pred_check_branch
        %152 = sbr.rel (%p149) target = $region12
      $region11: #{tpu_custom_call.1} parent=5 // pred_region
        %s153 = ssub.s32 %s19, 1
        // Predicated region
        $region13: #{tpu_custom_call.1} parent=11 // pred_check
          %p154 = pneg %p92
        $region14: #{tpu_custom_call.1} parent=11 // pred_check_branch
          %156 = sbr.rel (%p154) target = $region16
        $region15: #{tpu_custom_call.1} parent=11 // pred_region
          %s158 = ssub.s32 512, 512
          %159 = vsyncadd [#allocation6], %s158
          %s160 = sshll.u32 [#allocation7], 4
          %s161 = int_to_ptr.vmem [resolvable:$true] %s160
          %166 = dma.hbm_to_vmem [thread:$0]  %s2, 512, %s161, [#allocation6], 128, 128, 8
        $region16: #{tpu_custom_call.1} parent=11 // pred_fallthru
          _
        // Predicated region
        $region17: #{tpu_custom_call.1} parent=11 // pred_check
          %p167 = pneg %p113
        $region18: #{tpu_custom_call.1} parent=11 // pred_check_branch
          %169 = sbr.rel (%p167) target = $region20
        $region19: #{tpu_custom_call.1} parent=11 // pred_region
          _
        $region20: #{tpu_custom_call.1} parent=11 // pred_fallthru
          _
      $region12: #{tpu_custom_call.1} parent=5 // pred_fallthru
        _
      %p170 = scmp.lt.s32.totalorder %s19, 2
      // Predicated region
      $region21: #{tpu_custom_call.1} parent=5 // pred_check
        %p171 = pneg %p170
      $region22: #{tpu_custom_call.1} parent=5 // pred_check_branch
        %173 = sbr.rel (%p171) target = $region24
      $region23: #{tpu_custom_call.1} parent=5 // pred_region
        // Predicated region
        $region25: #{tpu_custom_call.1} parent=23 // pred_check
          %p174 = pneg %p39
        $region26: #{tpu_custom_call.1} parent=23 // pred_check_branch
          %176 = sbr.rel (%p174) target = $region28
        $region27: #{tpu_custom_call.1} parent=23 // pred_region
          %s177 = sand.u32 %s29, 1
          %s178 = scalar_lea.sflag [#allocation3], %s177
          %s179 = sand.u32 %s29, 1
          %s180 = smul.addr %s179, 8
          %s181 = scalar_lea.vmem [#allocation2], %s180
          %s183 = ssub.s32 128, 128
          %184 = vsyncadd %s178, %s183
          %s185 = smul.addr %s19, 128
          %s186 = scalar_lea.hbm %s0, %s185
          %s188 = sshll.u32 %s181, 4
          %s189 = int_to_ptr.vmem [resolvable:$true] %s188
          %191 = dma.hbm_to_vmem [thread:$0]  %s186, 128, %s189, %s178
        $region28: #{tpu_custom_call.1} parent=23 // pred_fallthru
          _
        // Predicated region
        $region29: #{tpu_custom_call.1} parent=23 // pred_check
          %p192 = pneg %p65
        $region30: #{tpu_custom_call.1} parent=23 // pred_check_branch
          %194 = sbr.rel (%p192) target = $region32
        $region31: #{tpu_custom_call.1} parent=23 // pred_region
          %s195 = sand.u32 %s19, 1
          %s196 = scalar_lea.sflag [#allocation6], %s195
          %s197 = sand.u32 %s55, 1
          %s198 = smul.addr %s197, 8
          %s199 = scalar_lea.vmem [#allocation5], %s198
          %s201 = ssub.s32 128, 128
          %202 = vsyncadd %s196, %s201
          %s203 = smul.addr %s19, 128
          %s204 = scalar_lea.hbm %s1, %s203
          %s206 = sshll.u32 %s199, 4
          %s207 = int_to_ptr.vmem [resolvable:$true] %s206
          %209 = dma.hbm_to_vmem [thread:$0]  %s204, 128, %s207, %s196
        $region32: #{tpu_custom_call.1} parent=23 // pred_fallthru
          _
      $region24: #{tpu_custom_call.1} parent=5 // pred_fallthru
        _
      %p210 = scmp.le.s32.totalorder 1, %s19
      %p211 = scmp.lt.s32.totalorder %s19, 3
      %p212 = pnand %p210, %p211
      %p213 = pneg %p212
      // Predicated region
      $region33: #{tpu_custom_call.1} parent=5 // pred_check
        _
      $region34: #{tpu_custom_call.1} parent=5 // pred_check_branch
        %215 = sbr.rel (%p212) target = $region36
      $region35: #{tpu_custom_call.1} parent=5 // pred_region
        %s216 = ssub.s32 %s19, 1
        %s217 = sand.u32 %s32, 1
        %s218 = scalar_lea.sflag [#allocation3], %s217
        %s219 = sand.u32 %s32, 1
        %s220 = smul.addr %s219, 8
        %s221 = scalar_lea.vmem [#allocation2], %s220
        // Predicated region
        $region37: #{tpu_custom_call.1} parent=35 // pred_check
          %p222 = pneg %p45
        $region38: #{tpu_custom_call.1} parent=35 // pred_check_branch
          %224 = sbr.rel (%p222) target = $region40
        $region39: #{tpu_custom_call.1} parent=35 // pred_region
          %225 = dma.done %s218, 128
        $region40: #{tpu_custom_call.1} parent=35 // pred_fallthru
          _
        %s226 = sand.u32 %s24, 1
        %s227 = scalar_lea.sflag [#allocation6], %s226
        %s228 = sand.u32 %s58, 1
        %s229 = smul.addr %s228, 8
        %s230 = scalar_lea.vmem [#allocation5], %s229
        // Predicated region
        $region41: #{tpu_custom_call.1} parent=35 // pred_check
          %p231 = pneg %p71
        $region42: #{tpu_custom_call.1} parent=35 // pred_check_branch
          %233 = sbr.rel (%p231) target = $region44
        $region43: #{tpu_custom_call.1} parent=35 // pred_region
          %234 = dma.done %s227, 128
        $region44: #{tpu_custom_call.1} parent=35 // pred_fallthru
          _
        // Predicated region
        $region45: #{tpu_custom_call.1} parent=35 // pred_check
          %p235 = pneg %p92
        $region46: #{tpu_custom_call.1} parent=35 // pred_check_branch
          %237 = sbr.rel (%p235) target = $region48
        $region47: #{tpu_custom_call.1} parent=35 // pred_region
          %238 = dma.done [#allocation6], 512
        $region48: #{tpu_custom_call.1} parent=35 // pred_fallthru
          _
        %s239 = sand.u32 %s32, 1
        %s240 = scalar_lea.sflag [#allocation3], %s239
        %s241 = sand.u32 %s32, 1
        %s242 = smul.addr %s241, 8
        %s243 = scalar_lea.vmem [#allocation2], %s242
        %p244 = pneg %p45
        %p245 = pneg %p42
        %s246 = sand.u32 %s24, 1
        %s247 = scalar_lea.sflag [#allocation6], %s246
        %s248 = sand.u32 %s58, 1
        %s249 = smul.addr %s248, 8
        %s250 = scalar_lea.vmem [#allocation5], %s249
        %p251 = pneg %p71
        %p252 = pneg %p68
        %p253 = pneg %p92
        %p254 = pneg %p89
        %p255 = pneg %p113
        %p256 = pneg %p110
        %p257 = pneg %p139
        %p258 = pneg %p136
        %s259 = sand.u32 %s126, 1
        %s260 = scalar_lea.sflag [#allocation4], %s259
        %s261 = sand.u32 %s126, 1
        %s262 = smul.addr %s261, 8
        %s263 = scalar_lea.vmem [#allocation8], %s262
        %v264 = vld [vmem:[%s221] sm:$0xff]
        %v265 = vld [vmem:[#allocation7] sm:$0xff]
        %v266 = vld [vmem:[#allocation7 + $0x8] sm:$0xff]
        %v267 = vld [vmem:[#allocation7 + $0x10] sm:$0xff]
        %v268 = vld [vmem:[#allocation7 + $0x18] sm:$0xff]
        %v269 = vld [vmem:[%s3] sm:$0x7]
        %v270 = vld [vmem:[%s230] sm:$0xff]
        %vm271 = vcmask 261120
        %v273 = vsel %vm271, %v264, 0
        %275 = vmatprep.subr.mxu0 0.0
        %276 = vmatpush1.msra.mxu0 %v265
        %277 = vmatprep.subr.mxu0 0.0
        %278 = vmatpush1.msra.mxu0 %v266
        %279 = vmatprep.subr.mxu0 0.0
        %280 = vmatpush1.msra.mxu0 %v267
        %281 = vmatprep.subr.mxu0 0.0
        %282 = vmatpush1.msra.mxu0 %v268
        %283 = vmatprep.subr.mxu0 0.0
        %284 = vmatpush1.msra.mxu0 0.0
        %285 = vmatprep.subr.mxu0 0.0
        %286 = vmatpush1.msra.mxu0 0.0
        %287 = vmatprep.subr.mxu0 0.0
        %288 = vmatpush1.msra.mxu0 0.0
        %289 = vmatprep.subr.mxu0 0.0
        %290 = vmatpush1.msra.mxu0 0.0
        %291 = vmatprep.subr.mxu0 0.0
        %292 = vmatpush1.msra.mxu0 0.0
        %293 = vmatprep.subr.mxu0 0.0
        %294 = vmatpush1.msra.mxu0 0.0
        %295 = vmatprep.subr.mxu0 0.0
        %296 = vmatpush1.msra.mxu0 0.0
        %297 = vmatprep.subr.mxu0 0.0
        %298 = vmatpush1.msra.mxu0 0.0
        %299 = vmatprep.subr.mxu0 0.0
        %300 = vmatpush1.msra.mxu0 0.0
        %301 = vmatprep.subr.mxu0 0.0
        %302 = vmatpush1.msra.mxu0 0.0
        %303 = vmatprep.subr.mxu0 0.0
        %304 = vmatpush1.msra.mxu0 0.0
        %305 = vmatprep.subr.mxu0 0.0
        %306 = vmatpush1.msra.mxu0 0.0
        %307 = vmatprep.subr.mxu0 0.0
        %308 = vmatpush1.msra.mxu0 0.0
        %309 = vmatprep.subr.mxu0 0.0
        %310 = vmatpush1.msra.mxu0 0.0
        %311 = vmatprep.subr.mxu0 0.0
        %312 = vmatpush1.msra.mxu0 0.0
        %313 = vmatprep.subr.mxu0 0.0
        %314 = vmatpush1.msra.mxu0 0.0
        %315 = vmatprep.subr.mxu0 0.0
        %316 = vmatpush1.msra.mxu0 0.0
        %317 = vmatprep.subr.mxu0 0.0
        %318 = vmatpush1.msra.mxu0 0.0
        %319 = vmatprep.subr.mxu0 0.0
        %320 = vmatpush1.msra.mxu0 0.0
        %321 = vmatprep.subr.mxu0 0.0
        %322 = vmatpush1.msra.mxu0 0.0
        %323 = vmatprep.subr.mxu0 0.0
        %324 = vmatpush1.msra.mxu0 0.0
        %325 = vmatprep.subr.mxu0 0.0
        %326 = vmatpush1.msra.mxu0 0.0
        %327 = vmatprep.subr.mxu0 0.0
        %328 = vmatpush1.msra.mxu0 0.0
        %329 = vmatprep.subr.mxu0 0.0
        %330 = vmatpush1.msra.mxu0 0.0
        %331 = vmatprep.subr.mxu0 0.0
        %332 = vmatpush1.msra.mxu0 0.0
        %333 = vmatprep.subr.mxu0 0.0
        %334 = vmatpush1.msra.mxu0 0.0
        %335 = vmatprep.subr.mxu0 0.0
        %336 = vmatpush1.msra.mxu0 0.0
        %337 = vmatprep.subr.mxu0 0.0
        %338 = vmatpush1.msra.mxu0 0.0
        %339 = vmatprep.mubr.f32.mxu0 0.0
        %340 = vmatmul.mubr.f32.gmra.mrb[0].mxu0 %v273
        %v341 = vpop.f32.mrb[0].mxu0
        %v342 = vadd.f32 %v270, %v341
        %v343 = vpop.f32.mrb[0].mxu0
        %344 = vdwg.mxu0
        %v345 = vlaneseq
        %v346 = vshrl.u32 %v345, 7
        %v347 = vsub.s32 0, %v346
        %v348 = vrot.slane %v269, %v347
        %v349 = vadd.f32 %v342, %v348
        %v350 = vsel %vm271, %v349, 0.0
        %351 = vadd.xlane.f32.xlu0 %v350
        %v352 = vpop.xlane.xlu0 %351
        %v353 = vrcp.pop 32.0
        %v354 = vmul.f32 %v352, %v353
        %v355 = vsub.f32 %v349, %v354
        %v356 = vmul.f32 %v355, %v355
        %v357 = vsel %vm271, %v356, 0.0
        %358 = vadd.xlane.f32.xlu0 %v357
        %v359 = vpop.xlane.xlu0 %358
        %v360 = vmul.f32 %v359, %v353
        %v361 = vadd.f32 %v360, 1e-12
        %v362 = vrsqrt.pop %v361
        %v363 = vmul.f32 %v355, %v362
        %v364 = vlaneseq
        %v365 = vshrl.u32 %v364, 7
        %v366 = vsub.s32 1, %v365
        %v367 = vrot.slane %v269, %v366
        %v368 = vmul.f32 %v363, %v367
        %v369 = vlaneseq
        %v370 = vshrl.u32 %v369, 7
        %v371 = vsub.s32 2, %v370
        %v372 = vrot.slane %v269, %v371
        %v373 = vadd.f32 %v368, %v372
        %374 = vst.msk [vmem:[%s263] sm:$0xff] %vm271, %v373
        %s375 = sand.u32 %s126, 1
        %s376 = scalar_lea.sflag [#allocation4], %s375
        %s377 = sand.u32 %s126, 1
        %s378 = smul.addr %s377, 8
        %s379 = scalar_lea.vmem [#allocation8], %s378
        // Predicated region
        $region49: #{tpu_custom_call.1} parent=35 // pred_check
          %p380 = pneg %p136
        $region50: #{tpu_custom_call.1} parent=35 // pred_check_branch
          %382 = sbr.rel (%p380) target = $region52
        $region51: #{tpu_custom_call.1} parent=35 // pred_region
          %s384 = ssub.s32 128, 128
          %385 = vsyncadd %s376, %s384
          %s386 = smul.addr %s24, 128
          %s387 = scalar_lea.hbm %s4, %s386
          %s389 = sshll.u32 %s379, 4
          %s390 = int_to_ptr.vmem [resolvable:$true] %s389
          %392 = dma.vmem_to_hbm [thread:$0]  %s390, 128, %s387, %s376
        $region52: #{tpu_custom_call.1} parent=35 // pred_fallthru
          _
      $region36: #{tpu_custom_call.1} parent=5 // pred_fallthru
        _
      %p393 = scmp.le.s32.totalorder 2, %s19
      // Predicated region
      $region53: #{tpu_custom_call.1} parent=5 // pred_check
        %p394 = pneg %p393
      $region54: #{tpu_custom_call.1} parent=5 // pred_check_branch
        %396 = sbr.rel (%p394) target = $region56
      $region55: #{tpu_custom_call.1} parent=5 // pred_region
        %s397 = ssub.s32 %s19, 2
        // Predicated region
        $region57: #{tpu_custom_call.1} parent=55 // pred_check
          %p398 = pneg %p142
        $region58: #{tpu_custom_call.1} parent=55 // pred_check_branch
          %400 = sbr.rel (%p398) target = $region60
        $region59: #{tpu_custom_call.1} parent=55 // pred_region
          %s401 = sand.u32 %s127, 1
          %s402 = scalar_lea.sflag [#allocation4], %s401
          %s403 = sand.u32 %s127, 1
          %s404 = smul.addr %s403, 8
          %s405 = scalar_lea.vmem [#allocation8], %s404
          %406 = dma.done %s402, 128
        $region60: #{tpu_custom_call.1} parent=55 // pred_fallthru
          _
      $region56: #{tpu_custom_call.1} parent=5 // pred_fallthru
        _
    $region6: #{tpu_custom_call.1} parent=1 // loop_footer
      %s23 = sadd.s32 1, %s19
    $region7: #{tpu_custom_call.1} parent=1 // loop_footer_branch
      %18 = sbr.rel target = $region3
    $region8: #{tpu_custom_call.1} parent=1 // loop_exit
      _
    %407 = vsyncpa [#allocation3], 1
    %s408 = scalar_lea.sflag [#allocation3], 1
    %409 = vsyncpa %s408, 1
    %410 = vsyncpa [#allocation6], 1
    %s411 = scalar_lea.sflag [#allocation6], 1
    %412 = vsyncpa %s411, 1
    %413 = vsyncpa [#allocation4], 1
    %s414 = scalar_lea.sflag [#allocation4], 1
    %415 = vsyncpa %s414, 1

</llo_original>
